<compile_context>
chip_gen: v5e
topology: v5e:2x2
jax: 0.10.0
libtpu: 0.0.40
codegen_flags: <defaults>
</compile_context>

<pallas_src>
import jax
import jax.numpy as jnp
from jax import lax
from jax.experimental import pallas as pl
from jax.experimental.pallas import tpu as pltpu

D_HID = 16
N_LAYERS = 8
# Beyond ~1024 lanes the two live f32 activation tiles start to pressure the 64-entry vreg file.
MAX_BATCH_TILE = 1024


def mlp_stack_kernel(x_ref, w_ref, bcol_ref, brow_ref, o_ref):
    """Fused 8-layer MLP stack; one batch tile per grid step.

    x_ref   : (TB, 16)    input tile, natural (batch, feature) layout
    w_ref   : (9, 16, 16) packed matmul operands:
                  [0]    = w1[0]              (torch (out, in) layout)
                  [1..7] = w1[l] @ w2[l-1]    (offline-fused mid matrices)
                  [8]    = w2[7].T            (pre-transposed so the last dot is A^T @ B)
    bcol_ref: (8, 16, 1)  first + fused mid biases as columns (broadcast over lanes), f32
    brow_ref: (1, 16)     last bias as a row (broadcast over sublanes), f32
    o_ref   : (TB, 16)
    """
    mxu_dtype = w_ref.dtype  # bf16 (default) or f32; accumulation is always f32.

    # First layer absorbs the input transpose:  h = w1[0] @ x^T  -> (16, TB), batch in lanes.
    h = lax.dot_general(
        w_ref[0], x_ref[...].astype(mxu_dtype),
        (((1,), (1,)), ((), ())), preferred_element_type=jnp.float32)
    h = jnp.maximum(h + bcol_ref[0], 0.0)  # bias-add + ReLU in f32

    # 7 fused mid layers (static unroll):  h <- relu(W'_l @ h + b'_l), lane-dense (16, TB).
    for l in range(1, N_LAYERS):
        h = jnp.dot(w_ref[l], h.astype(mxu_dtype), preferred_element_type=jnp.float32)
        h = jnp.maximum(h + bcol_ref[l], 0.0)

    # Last layer absorbs the output transpose:  out = h^T @ w2[7]^T  -> (TB, 16).
    out = lax.dot_general(
        h.astype(mxu_dtype), w_ref[N_LAYERS],
        (((0,), (0,)), ((), ())), preferred_element_type=jnp.float32)
    o_ref[...] = (out + brow_ref[...]).astype(o_ref.dtype)


def prepare_params(w1, b1, w2, b2, *, matmul_dtype=jnp.bfloat16):
    """Offline fusion + packing (host side, done once; not on the kernel's critical path).

    w1/w2: (L, D, D) torch (out, in) layout; b1/b2: (L, D).
    Fusion is exact in real arithmetic: with no ReLU between layer l's second Linear and layer
    l+1's first Linear, W'_l = w1[l+1] @ w2[l] and b'_l = w1[l+1] @ b2[l] + b1[l+1].
    """
    w_mid = jnp.einsum("lij,ljk->lik", w1[1:], w2[:-1])               # (L-1, D, D), f32
    b_mid = jnp.einsum("lij,lj->li", w1[1:], b2[:-1]) + b1[1:]        # (L-1, D),   f32
    w_all = jnp.concatenate(
        [w1[:1], w_mid, jnp.transpose(w2[-1])[None]], axis=0).astype(matmul_dtype)  # (L+1, D, D)
    b_col = jnp.concatenate([b1[:1], b_mid], axis=0)[:, :, None].astype(jnp.float32)  # (L, D, 1)
    b_row = b2[-1][None, :].astype(jnp.float32)                        # (1, D)
    return w_all, b_col, b_row


def mlp_stack_forward(x, prepared_params):
    """x: (B, D) f32 in natural layout.  Returns (B, D) f32."""
    w_all, b_col, b_row = prepared_params
    B, D = x.shape
    tb = B if B <= MAX_BATCH_TILE else MAX_BATCH_TILE
    n_tiles = pl.cdiv(B, tb)
    # Note: if B is not a multiple of tb, the ragged last tile is safe — each batch row is
    # independent, pad-lane reads are garbage-but-unused, and out-of-range stores are masked.

    return pl.pallas_call(
        mlp_stack_kernel,
        out_shape=jax.ShapeDtypeStruct((B, D), x.dtype),
        grid=(n_tiles,),
        in_specs=[
            pl.BlockSpec((tb, D), lambda i: (i, 0)),             # x: tiled over batch (natural layout)
            pl.BlockSpec(w_all.shape, lambda i: (0, 0, 0)),      # packed weights: VMEM-resident
            pl.BlockSpec(b_col.shape, lambda i: (0, 0, 0)),      # column biases:  VMEM-resident
            pl.BlockSpec(b_row.shape, lambda i: (0, 0)),         # last-layer row bias
        ],
        out_specs=pl.BlockSpec((tb, D), lambda i: (i, 0)),
        compiler_params=pltpu.CompilerParams(
            # "parallel" is harmless (and moot when n_tiles == 1).  On v7x, CORE_PARALLEL / a
            # core_map split is only worth benchmarking when n_tiles >= 2.
            dimension_semantics=("parallel",),
        ),
    )(x, w_all, b_col, b_row)


def init_params(key, n_layers=N_LAYERS, d_hid=D_HID):
    """Deterministic init mimicking torch.nn.Linear default: U(-1/sqrt(in), 1/sqrt(in)).
    Weights stored in torch layout: (layer, out_features, in_features)."""
    bound = 1.0 / jnp.sqrt(jnp.float32(d_hid))
    keys = jax.random.split(key, 4)
    w1 = jax.random.uniform(keys[0], (n_layers, d_hid, d_hid), jnp.float32, -bound, bound)
    b1 = jax.random.uniform(keys[1], (n_layers, d_hid), jnp.float32, -bound, bound)
    w2 = jax.random.uniform(keys[2], (n_layers, d_hid, d_hid), jnp.float32, -bound, bound)
    b2 = jax.random.uniform(keys[3], (n_layers, d_hid), jnp.float32, -bound, bound)
    return w1, b1, w2, b2


def reference(x, w1, b1, w2, b2):
    """Pure-JAX reference with the original (unfused) torch semantics: x @ W.T + b per Linear."""
    h = x
    for l in range(w1.shape[0]):
        h = jnp.maximum(h @ w1[l].T + b1[l], 0.0) @ w2[l].T + b2[l]
    return h


if __name__ == "__main__":
    key = jax.random.PRNGKey(0)
    k_x, k_p = jax.random.split(key)

    B = 512  # one lane-dense batch tile -> the whole forward is a single grid step
    x = jax.random.normal(k_x, (B, D_HID), jnp.float32)
    w1, b1, w2, b2 = init_params(k_p)

    ref = reference(x, w1, b1, w2, b2)

    # Tolerance: MXU operands are bf16 (f32 accumulation), and even the f32-operand variant may use
    # reduced MXU precision at XLA's default — so both checks use the ~1e-2-level bound called out
    # in the performance review.
    tol = dict(atol=3e-2, rtol=3e-2)

    # Performance-default path: bf16 MXU operands.
    out_bf16 = jax.block_until_ready(
        mlp_stack_forward(x, prepare_params(w1, b1, w2, b2, matmul_dtype=jnp.bfloat16)))
    assert out_bf16.shape == (B, D_HID)
    assert jnp.allclose(out_bf16, ref, **tol), "bf16-operand kernel mismatch vs reference"

    # f32-operand path (same kernel, same fusion) for the numerics-sensitive configuration.
    out_f32 = jax.block_until_ready(
        mlp_stack_forward(x, prepare_params(w1, b1, w2, b2, matmul_dtype=jnp.float32)))
    assert jnp.allclose(out_f32, ref, **tol), "f32-operand kernel mismatch vs reference"

    print("KERNEL_OK")
</pallas_src>

<mosaic_0001>
module attributes {stable_mosaic.version = 11 : i64} {
  func.func @mlp_stack_kernel(%arg0: i32, %arg1: memref<512x16xf32, #tpu.memory_space<vmem>>, %arg2: memref<9x16x16xbf16, #tpu.memory_space<vmem>>, %arg3: memref<8x16x1xf32, #tpu.memory_space<vmem>>, %arg4: memref<1x16xf32, #tpu.memory_space<vmem>>, %arg5: memref<512x16xf32, #tpu.memory_space<vmem>>) attributes {dimension_semantics = [#tpu.dimension_semantics<parallel>], iteration_bounds = array<i64: 1>, scalar_prefetch = 0 : i64, scratch_operands = 0 : i64, tpu.core_type = #tpu.core_type<tc>, window_params = [{transform_indices = @transform_0, window_bounds = array<i64: 512, 16>}, {pipeline_mode = #tpu.pipeline_mode<synchronous>, transform_indices = @transform_1, window_bounds = array<i64: 9, 16, 16>}, {pipeline_mode = #tpu.pipeline_mode<synchronous>, transform_indices = @transform_2, window_bounds = array<i64: 8, 16, 1>}, {pipeline_mode = #tpu.pipeline_mode<synchronous>, transform_indices = @transform_3, window_bounds = array<i64: 1, 16>}, {transform_indices = @transform_4, window_bounds = array<i64: 512, 16>}]} {
    %c0 = arith.constant 0 : index
    %c0_0 = arith.constant 0 : index
    %c0_1 = arith.constant 0 : index
    %0 = vector.load %arg2[%c0, %c0_0, %c0_1] : memref<9x16x16xbf16, #tpu.memory_space<vmem>>, vector<1x16x16xbf16>
    %1 = vector.shape_cast %0 : vector<1x16x16xbf16> to vector<16x16xbf16>
    %c0_2 = arith.constant 0 : index
    %c0_3 = arith.constant 0 : index
    %2 = vector.load %arg1[%c0_2, %c0_3] : memref<512x16xf32, #tpu.memory_space<vmem>>, vector<512x16xf32>
    %3 = arith.truncf %2 : vector<512x16xf32> to vector<512x16xbf16>
    %cst = arith.constant dense<0.000000e+00> : vector<16x512xf32>
    %4 = tpu.matmul %1, %3, %cst {dimension_numbers = #tpu.dot_dimension_numbers<[1], [1], [0], [0], [0, 0, 1, 0], [], []>} : vector<16x16xbf16>, vector<512x16xbf16>, vector<16x512xf32> -> vector<16x512xf32>
    %c0_4 = arith.constant 0 : index
    %c0_5 = arith.constant 0 : index
    %c0_6 = arith.constant 0 : index
    %5 = vector.load %arg3[%c0_4, %c0_5, %c0_6] : memref<8x16x1xf32, #tpu.memory_space<vmem>>, vector<1x16x1xf32>
    %6 = vector.shape_cast %5 : vector<1x16x1xf32> to vector<16x1xf32>
    %7 = vector.broadcast %6 : vector<16x1xf32> to vector<16x512xf32>
    %8 = arith.addf %4, %7 : vector<16x512xf32>
    %cst_7 = arith.constant 0.000000e+00 : f32
    %9 = vector.broadcast %cst_7 : f32 to vector<16x512xf32>
    %10 = arith.maximumf %8, %9 : vector<16x512xf32>
    %c1 = arith.constant 1 : index
    %c0_8 = arith.constant 0 : index
    %c0_9 = arith.constant 0 : index
    %11 = vector.load %arg2[%c1, %c0_8, %c0_9] : memref<9x16x16xbf16, #tpu.memory_space<vmem>>, vector<1x16x16xbf16>
    %12 = vector.shape_cast %11 : vector<1x16x16xbf16> to vector<16x16xbf16>
    %13 = arith.truncf %10 : vector<16x512xf32> to vector<16x512xbf16>
    %cst_10 = arith.constant dense<0.000000e+00> : vector<16x512xf32>
    %14 = tpu.matmul %12, %13, %cst_10 {dimension_numbers = #tpu.dot_dimension_numbers<[1], [0], [0], [1], [0, 0, 1, 1], [], []>} : vector<16x16xbf16>, vector<16x512xbf16>, vector<16x512xf32> -> vector<16x512xf32>
    %c1_11 = arith.constant 1 : index
    %c0_12 = arith.constant 0 : index
    %c0_13 = arith.constant 0 : index
    %15 = vector.load %arg3[%c1_11, %c0_12, %c0_13] : memref<8x16x1xf32, #tpu.memory_space<vmem>>, vector<1x16x1xf32>
    %16 = vector.shape_cast %15 : vector<1x16x1xf32> to vector<16x1xf32>
    %17 = vector.broadcast %16 : vector<16x1xf32> to vector<16x512xf32>
    %18 = arith.addf %14, %17 : vector<16x512xf32>
    %cst_14 = arith.constant 0.000000e+00 : f32
    %19 = vector.broadcast %cst_14 : f32 to vector<16x512xf32>
    %20 = arith.maximumf %18, %19 : vector<16x512xf32>
    %c2 = arith.constant 2 : index
    %c0_15 = arith.constant 0 : index
    %c0_16 = arith.constant 0 : index
    %21 = vector.load %arg2[%c2, %c0_15, %c0_16] : memref<9x16x16xbf16, #tpu.memory_space<vmem>>, vector<1x16x16xbf16>
    %22 = vector.shape_cast %21 : vector<1x16x16xbf16> to vector<16x16xbf16>
    %23 = arith.truncf %20 : vector<16x512xf32> to vector<16x512xbf16>
    %cst_17 = arith.constant dense<0.000000e+00> : vector<16x512xf32>
    %24 = tpu.matmul %22, %23, %cst_17 {dimension_numbers = #tpu.dot_dimension_numbers<[1], [0], [0], [1], [0, 0, 1, 1], [], []>} : vector<16x16xbf16>, vector<16x512xbf16>, vector<16x512xf32> -> vector<16x512xf32>
    %c2_18 = arith.constant 2 : index
    %c0_19 = arith.constant 0 : index
    %c0_20 = arith.constant 0 : index
    %25 = vector.load %arg3[%c2_18, %c0_19, %c0_20] : memref<8x16x1xf32, #tpu.memory_space<vmem>>, vector<1x16x1xf32>
    %26 = vector.shape_cast %25 : vector<1x16x1xf32> to vector<16x1xf32>
    %27 = vector.broadcast %26 : vector<16x1xf32> to vector<16x512xf32>
    %28 = arith.addf %24, %27 : vector<16x512xf32>
    %cst_21 = arith.constant 0.000000e+00 : f32
    %29 = vector.broadcast %cst_21 : f32 to vector<16x512xf32>
    %30 = arith.maximumf %28, %29 : vector<16x512xf32>
    %c3 = arith.constant 3 : index
    %c0_22 = arith.constant 0 : index
    %c0_23 = arith.constant 0 : index
    %31 = vector.load %arg2[%c3, %c0_22, %c0_23] : memref<9x16x16xbf16, #tpu.memory_space<vmem>>, vector<1x16x16xbf16>
    %32 = vector.shape_cast %31 : vector<1x16x16xbf16> to vector<16x16xbf16>
    %33 = arith.truncf %30 : vector<16x512xf32> to vector<16x512xbf16>
    %cst_24 = arith.constant dense<0.000000e+00> : vector<16x512xf32>
    %34 = tpu.matmul %32, %33, %cst_24 {dimension_numbers = #tpu.dot_dimension_numbers<[1], [0], [0], [1], [0, 0, 1, 1], [], []>} : vector<16x16xbf16>, vector<16x512xbf16>, vector<16x512xf32> -> vector<16x512xf32>
    %c3_25 = arith.constant 3 : index
    %c0_26 = arith.constant 0 : index
    %c0_27 = arith.constant 0 : index
    %35 = vector.load %arg3[%c3_25, %c0_26, %c0_27] : memref<8x16x1xf32, #tpu.memory_space<vmem>>, vector<1x16x1xf32>
    %36 = vector.shape_cast %35 : vector<1x16x1xf32> to vector<16x1xf32>
    %37 = vector.broadcast %36 : vector<16x1xf32> to vector<16x512xf32>
    %38 = arith.addf %34, %37 : vector<16x512xf32>
    %cst_28 = arith.constant 0.000000e+00 : f32
    %39 = vector.broadcast %cst_28 : f32 to vector<16x512xf32>
    %40 = arith.maximumf %38, %39 : vector<16x512xf32>
    %c4 = arith.constant 4 : index
    %c0_29 = arith.constant 0 : index
    %c0_30 = arith.constant 0 : index
    %41 = vector.load %arg2[%c4, %c0_29, %c0_30] : memref<9x16x16xbf16, #tpu.memory_space<vmem>>, vector<1x16x16xbf16>
    %42 = vector.shape_cast %41 : vector<1x16x16xbf16> to vector<16x16xbf16>
    %43 = arith.truncf %40 : vector<16x512xf32> to vector<16x512xbf16>
    %cst_31 = arith.constant dense<0.000000e+00> : vector<16x512xf32>
    %44 = tpu.matmul %42, %43, %cst_31 {dimension_numbers = #tpu.dot_dimension_numbers<[1], [0], [0], [1], [0, 0, 1, 1], [], []>} : vector<16x16xbf16>, vector<16x512xbf16>, vector<16x512xf32> -> vector<16x512xf32>
    %c4_32 = arith.constant 4 : index
    %c0_33 = arith.constant 0 : index
    %c0_34 = arith.constant 0 : index
    %45 = vector.load %arg3[%c4_32, %c0_33, %c0_34] : memref<8x16x1xf32, #tpu.memory_space<vmem>>, vector<1x16x1xf32>
    %46 = vector.shape_cast %45 : vector<1x16x1xf32> to vector<16x1xf32>
    %47 = vector.broadcast %46 : vector<16x1xf32> to vector<16x512xf32>
    %48 = arith.addf %44, %47 : vector<16x512xf32>
    %cst_35 = arith.constant 0.000000e+00 : f32
    %49 = vector.broadcast %cst_35 : f32 to vector<16x512xf32>
    %50 = arith.maximumf %48, %49 : vector<16x512xf32>
    %c5 = arith.constant 5 : index
    %c0_36 = arith.constant 0 : index
    %c0_37 = arith.constant 0 : index
    %51 = vector.load %arg2[%c5, %c0_36, %c0_37] : memref<9x16x16xbf16, #tpu.memory_space<vmem>>, vector<1x16x16xbf16>
    %52 = vector.shape_cast %51 : vector<1x16x16xbf16> to vector<16x16xbf16>
    %53 = arith.truncf %50 : vector<16x512xf32> to vector<16x512xbf16>
    %cst_38 = arith.constant dense<0.000000e+00> : vector<16x512xf32>
    %54 = tpu.matmul %52, %53, %cst_38 {dimension_numbers = #tpu.dot_dimension_numbers<[1], [0], [0], [1], [0, 0, 1, 1], [], []>} : vector<16x16xbf16>, vector<16x512xbf16>, vector<16x512xf32> -> vector<16x512xf32>
    %c5_39 = arith.constant 5 : index
    %c0_40 = arith.constant 0 : index
    %c0_41 = arith.constant 0 : index
    %55 = vector.load %arg3[%c5_39, %c0_40, %c0_41] : memref<8x16x1xf32, #tpu.memory_space<vmem>>, vector<1x16x1xf32>
    %56 = vector.shape_cast %55 : vector<1x16x1xf32> to vector<16x1xf32>
    %57 = vector.broadcast %56 : vector<16x1xf32> to vector<16x512xf32>
    %58 = arith.addf %54, %57 : vector<16x512xf32>
    %cst_42 = arith.constant 0.000000e+00 : f32
    %59 = vector.broadcast %cst_42 : f32 to vector<16x512xf32>
    %60 = arith.maximumf %58, %59 : vector<16x512xf32>
    %c6 = arith.constant 6 : index
    %c0_43 = arith.constant 0 : index
    %c0_44 = arith.constant 0 : index
    %61 = vector.load %arg2[%c6, %c0_43, %c0_44] : memref<9x16x16xbf16, #tpu.memory_space<vmem>>, vector<1x16x16xbf16>
    %62 = vector.shape_cast %61 : vector<1x16x16xbf16> to vector<16x16xbf16>
    %63 = arith.truncf %60 : vector<16x512xf32> to vector<16x512xbf16>
    %cst_45 = arith.constant dense<0.000000e+00> : vector<16x512xf32>
    %64 = tpu.matmul %62, %63, %cst_45 {dimension_numbers = #tpu.dot_dimension_numbers<[1], [0], [0], [1], [0, 0, 1, 1], [], []>} : vector<16x16xbf16>, vector<16x512xbf16>, vector<16x512xf32> -> vector<16x512xf32>
    %c6_46 = arith.constant 6 : index
    %c0_47 = arith.constant 0 : index
    %c0_48 = arith.constant 0 : index
    %65 = vector.load %arg3[%c6_46, %c0_47, %c0_48] : memref<8x16x1xf32, #tpu.memory_space<vmem>>, vector<1x16x1xf32>
    %66 = vector.shape_cast %65 : vector<1x16x1xf32> to vector<16x1xf32>
    %67 = vector.broadcast %66 : vector<16x1xf32> to vector<16x512xf32>
    %68 = arith.addf %64, %67 : vector<16x512xf32>
    %cst_49 = arith.constant 0.000000e+00 : f32
    %69 = vector.broadcast %cst_49 : f32 to vector<16x512xf32>
    %70 = arith.maximumf %68, %69 : vector<16x512xf32>
    %c7 = arith.constant 7 : index
    %c0_50 = arith.constant 0 : index
    %c0_51 = arith.constant 0 : index
    %71 = vector.load %arg2[%c7, %c0_50, %c0_51] : memref<9x16x16xbf16, #tpu.memory_space<vmem>>, vector<1x16x16xbf16>
    %72 = vector.shape_cast %71 : vector<1x16x16xbf16> to vector<16x16xbf16>
    %73 = arith.truncf %70 : vector<16x512xf32> to vector<16x512xbf16>
    %cst_52 = arith.constant dense<0.000000e+00> : vector<16x512xf32>
    %74 = tpu.matmul %72, %73, %cst_52 {dimension_numbers = #tpu.dot_dimension_numbers<[1], [0], [0], [1], [0, 0, 1, 1], [], []>} : vector<16x16xbf16>, vector<16x512xbf16>, vector<16x512xf32> -> vector<16x512xf32>
    %c7_53 = arith.constant 7 : index
    %c0_54 = arith.constant 0 : index
    %c0_55 = arith.constant 0 : index
    %75 = vector.load %arg3[%c7_53, %c0_54, %c0_55] : memref<8x16x1xf32, #tpu.memory_space<vmem>>, vector<1x16x1xf32>
    %76 = vector.shape_cast %75 : vector<1x16x1xf32> to vector<16x1xf32>
    %77 = vector.broadcast %76 : vector<16x1xf32> to vector<16x512xf32>
    %78 = arith.addf %74, %77 : vector<16x512xf32>
    %cst_56 = arith.constant 0.000000e+00 : f32
    %79 = vector.broadcast %cst_56 : f32 to vector<16x512xf32>
    %80 = arith.maximumf %78, %79 : vector<16x512xf32>
    %81 = arith.truncf %80 : vector<16x512xf32> to vector<16x512xbf16>
    %c8 = arith.constant 8 : index
    %c0_57 = arith.constant 0 : index
    %c0_58 = arith.constant 0 : index
    %82 = vector.load %arg2[%c8, %c0_57, %c0_58] : memref<9x16x16xbf16, #tpu.memory_space<vmem>>, vector<1x16x16xbf16>
    %83 = vector.shape_cast %82 : vector<1x16x16xbf16> to vector<16x16xbf16>
    %cst_59 = arith.constant dense<0.000000e+00> : vector<512x16xf32>
    %84 = tpu.matmul %81, %83, %cst_59 {dimension_numbers = #tpu.dot_dimension_numbers<[0], [0], [1], [1], [0, 1, 1, 1], [], []>} : vector<16x512xbf16>, vector<16x16xbf16>, vector<512x16xf32> -> vector<512x16xf32>
    %c0_60 = arith.constant 0 : index
    %c0_61 = arith.constant 0 : index
    %85 = vector.load %arg4[%c0_60, %c0_61] : memref<1x16xf32, #tpu.memory_space<vmem>>, vector<1x16xf32>
    %86 = vector.broadcast %85 : vector<1x16xf32> to vector<512x16xf32>
    %87 = arith.addf %84, %86 : vector<512x16xf32>
    %c0_62 = arith.constant 0 : index
    %c0_63 = arith.constant 0 : index
    %88 = vector.load %arg5[%c0_62, %c0_63] : memref<512x16xf32, #tpu.memory_space<vmem>>, vector<512x16xf32>
    tpu.vector_store %arg5[%c0_62, %c0_63], %87 {strides = array<i32>} : memref<512x16xf32, #tpu.memory_space<vmem>>, vector<512x16xf32>,
    return
  }
  func.func @transform_0(%arg0: i32) -> (i32, i32) {
    %c0_i32 = arith.constant 0 : i32
    %c0_i32_0 = arith.constant 0 : i32
    return %arg0, %c0_i32 : i32, i32
  }
  func.func @transform_1(%arg0: i32) -> (i32, i32, i32) {
    %c0_i32 = arith.constant 0 : i32
    %c0_i32_0 = arith.constant 0 : i32
    %c0_i32_1 = arith.constant 0 : i32
    %c0_i32_2 = arith.constant 0 : i32
    return %c0_i32, %c0_i32_0, %c0_i32_1 : i32, i32, i32
  }
  func.func @transform_2(%arg0: i32) -> (i32, i32, i32) {
    %c0_i32 = arith.constant 0 : i32
    %c0_i32_0 = arith.constant 0 : i32
    %c0_i32_1 = arith.constant 0 : i32
    %c0_i32_2 = arith.constant 0 : i32
    return %c0_i32, %c0_i32_0, %c0_i32_1 : i32, i32, i32
  }
  func.func @transform_3(%arg0: i32) -> (i32, i32) {
    %c0_i32 = arith.constant 0 : i32
    %c0_i32_0 = arith.constant 0 : i32
    %c0_i32_1 = arith.constant 0 : i32
    return %c0_i32, %c0_i32_0 : i32, i32
  }
  func.func @transform_4(%arg0: i32) -> (i32, i32) {
    %c0_i32 = arith.constant 0 : i32
    %c0_i32_0 = arith.constant 0 : i32
    return %arg0, %c0_i32 : i32, i32
  }
}

</mosaic_0001>

<llo_original>
// kernel: tpu_custom_call.1
$region0: #{tpu_custom_call.1}
  #allocation0 [shape = 'u32[]', space=smem, size = 0x4, offset = 0x4, fixed_abs, tag = 'smem constant byte address 0x4 - core index']
  #allocation1 [shape = 'u32[72,128]{1,0:T(1,128)}', space=vmem, size = 0x9000, scoped, tag = 'internal scratch']
  %s0 = inlined_call_operand.vmem [shape: f32[512,16], index: 0, kind: input, shape index: {}]
  %s1 = inlined_call_operand.vmem [shape: bf16[9,16,16], index: 1, kind: input, shape index: {}]
  %s2 = inlined_call_operand.vmem [shape: f32[8,16,1], index: 2, kind: input, shape index: {}]
  %s3 = inlined_call_operand.vmem [shape: f32[1,16], index: 3, kind: input, shape index: {}]
  %s4 = inlined_call_operand.vmem [shape: f32[512,16], index: 4, kind: output, shape index: {}]
  %s5 = sld [smem:[#allocation0]]
  $region26: #{tpu_custom_call.1} parent=0
    _
  %s7 = ssub.s32 1, %s5
  %s8 = scalar_select 0, %s7, %s5
  // Predicated region
  $region2: #{tpu_custom_call.1} parent=0 // pred_check
    _
  $region3: #{tpu_custom_call.1} parent=0 // pred_check_branch
    %10 = sbr.rel (0) target = $region5
  $region4: #{tpu_custom_call.1} parent=0 // pred_region
    _
  $region5: #{tpu_custom_call.1} parent=0 // pred_fallthru
    _
  // Predicated region
  $region6: #{tpu_custom_call.1} parent=0 // pred_check
    _
  $region7: #{tpu_custom_call.1} parent=0 // pred_check_branch
    %12 = sbr.rel (0) target = $region9
  $region8: #{tpu_custom_call.1} parent=0 // pred_region
    _
  $region9: #{tpu_custom_call.1} parent=0 // pred_fallthru
    _
  // Predicated region
  $region10: #{tpu_custom_call.1} parent=0 // pred_check
    _
  $region11: #{tpu_custom_call.1} parent=0 // pred_check_branch
    %14 = sbr.rel (0) target = $region13
  $region12: #{tpu_custom_call.1} parent=0 // pred_region
    _
  $region13: #{tpu_custom_call.1} parent=0 // pred_fallthru
    _
  // Predicated region
  $region14: #{tpu_custom_call.1} parent=0 // pred_check
    _
  $region15: #{tpu_custom_call.1} parent=0 // pred_check_branch
    %16 = sbr.rel (0) target = $region17
  $region16: #{tpu_custom_call.1} parent=0 // pred_region
    _
  $region17: #{tpu_custom_call.1} parent=0 // pred_fallthru
    _
  %v18 = vld [vmem:[%s1] sm:$0xf]
  %v19 = vld [vmem:[%s1 + $0x4] sm:$0xf]
  %v20 = vld [vmem:[%s0] sm:$0xff]
  %v21 = vld [vmem:[%s0 + $0x8] sm:$0xff]
  %v22 = vld [vmem:[%s0 + $0x10] sm:$0xff]
  %v23 = vld [vmem:[%s0 + $0x18] sm:$0xff]
  %v24 = vld [vmem:[%s0 + $0x20] sm:$0xff]
  %v25 = vld [vmem:[%s0 + $0x28] sm:$0xff]
  %v26 = vld [vmem:[%s0 + $0x30] sm:$0xff]
  %v27 = vld [vmem:[%s0 + $0x38] sm:$0xff]
  %v28 = vld [vmem:[%s0 + $0x40] sm:$0xff]
  %v29 = vld [vmem:[%s0 + $0x48] sm:$0xff]
  %v30 = vld [vmem:[%s0 + $0x50] sm:$0xff]
  %v31 = vld [vmem:[%s0 + $0x58] sm:$0xff]
  %v32 = vld [vmem:[%s0 + $0x60] sm:$0xff]
  %v33 = vld [vmem:[%s0 + $0x68] sm:$0xff]
  %v34 = vld [vmem:[%s0 + $0x70] sm:$0xff]
  %v35 = vld [vmem:[%s0 + $0x78] sm:$0xff]
  %v36 = vld [vmem:[%s0 + $0x80] sm:$0xff]
  %v37 = vld [vmem:[%s0 + $0x88] sm:$0xff]
  %v38 = vld [vmem:[%s0 + $0x90] sm:$0xff]
  %v39 = vld [vmem:[%s0 + $0x98] sm:$0xff]
  %v40 = vld [vmem:[%s0 + $0xa0] sm:$0xff]
  %v41 = vld [vmem:[%s0 + $0xa8] sm:$0xff]
  %v42 = vld [vmem:[%s0 + $0xb0] sm:$0xff]
  %v43 = vld [vmem:[%s0 + $0xb8] sm:$0xff]
  %v44 = vld [vmem:[%s0 + $0xc0] sm:$0xff]
  %v45 = vld [vmem:[%s0 + $0xc8] sm:$0xff]
  %v46 = vld [vmem:[%s0 + $0xd0] sm:$0xff]
  %v47 = vld [vmem:[%s0 + $0xd8] sm:$0xff]
  %v48 = vld [vmem:[%s0 + $0xe0] sm:$0xff]
  %v49 = vld [vmem:[%s0 + $0xe8] sm:$0xff]
  %v50 = vld [vmem:[%s0 + $0xf0] sm:$0xff]
  %v51 = vld [vmem:[%s0 + $0xf8] sm:$0xff]
  %v52 = vld [vmem:[%s0 + $0x100] sm:$0xff]
  %v53 = vld [vmem:[%s0 + $0x108] sm:$0xff]
  %v54 = vld [vmem:[%s0 + $0x110] sm:$0xff]
  %v55 = vld [vmem:[%s0 + $0x118] sm:$0xff]
  %v56 = vld [vmem:[%s0 + $0x120] sm:$0xff]
  %v57 = vld [vmem:[%s0 + $0x128] sm:$0xff]
  %v58 = vld [vmem:[%s0 + $0x130] sm:$0xff]
  %v59 = vld [vmem:[%s0 + $0x138] sm:$0xff]
  %v60 = vld [vmem:[%s0 + $0x140] sm:$0xff]
  %v61 = vld [vmem:[%s0 + $0x148] sm:$0xff]
  %v62 = vld [vmem:[%s0 + $0x150] sm:$0xff]
  %v63 = vld [vmem:[%s0 + $0x158] sm:$0xff]
  %v64 = vld [vmem:[%s0 + $0x160] sm:$0xff]
  %v65 = vld [vmem:[%s0 + $0x168] sm:$0xff]
  %v66 = vld [vmem:[%s0 + $0x170] sm:$0xff]
  %v67 = vld [vmem:[%s0 + $0x178] sm:$0xff]
  %v68 = vld [vmem:[%s0 + $0x180] sm:$0xff]
  %v69 = vld [vmem:[%s0 + $0x188] sm:$0xff]
  %v70 = vld [vmem:[%s0 + $0x190] sm:$0xff]
  %v71 = vld [vmem:[%s0 + $0x198] sm:$0xff]
  %v72 = vld [vmem:[%s0 + $0x1a0] sm:$0xff]
  %v73 = vld [vmem:[%s0 + $0x1a8] sm:$0xff]
  %v74 = vld [vmem:[%s0 + $0x1b0] sm:$0xff]
  %v75 = vld [vmem:[%s0 + $0x1b8] sm:$0xff]
  %v76 = vld [vmem:[%s0 + $0x1c0] sm:$0xff]
  %v77 = vld [vmem:[%s0 + $0x1c8] sm:$0xff]
  %v78 = vld [vmem:[%s0 + $0x1d0] sm:$0xff]
  %v79 = vld [vmem:[%s0 + $0x1d8] sm:$0xff]
  %v80 = vld [vmem:[%s0 + $0x1e0] sm:$0xff]
  %v81 = vld [vmem:[%s0 + $0x1e8] sm:$0xff]
  %v82 = vld [vmem:[%s0 + $0x1f0] sm:$0xff]
  %v83 = vld [vmem:[%s0 + $0x1f8] sm:$0xff]
  %v84 = vpack.c.bf16 %v21, %v20
  %v85 = vpack.c.bf16 %v23, %v22
  %v86 = vpack.c.bf16 %v25, %v24
  %v87 = vpack.c.bf16 %v27, %v26
  %v88 = vpack.c.bf16 %v29, %v28
  %v89 = vpack.c.bf16 %v31, %v30
  %v90 = vpack.c.bf16 %v33, %v32
  %v91 = vpack.c.bf16 %v35, %v34
  %v92 = vpack.c.bf16 %v37, %v36
  %v93 = vpack.c.bf16 %v39, %v38
  %v94 = vpack.c.bf16 %v41, %v40
  %v95 = vpack.c.bf16 %v43, %v42
  %v96 = vpack.c.bf16 %v45, %v44
  %v97 = vpack.c.bf16 %v47, %v46
  %v98 = vpack.c.bf16 %v49, %v48
  %v99 = vpack.c.bf16 %v51, %v50
  %v100 = vpack.c.bf16 %v53, %v52
  %v101 = vpack.c.bf16 %v55, %v54
  %v102 = vpack.c.bf16 %v57, %v56
  %v103 = vpack.c.bf16 %v59, %v58
  %v104 = vpack.c.bf16 %v61, %v60
  %v105 = vpack.c.bf16 %v63, %v62
  %v106 = vpack.c.bf16 %v65, %v64
  %v107 = vpack.c.bf16 %v67, %v66
  %v108 = vpack.c.bf16 %v69, %v68
  %v109 = vpack.c.bf16 %v71, %v70
  %v110 = vpack.c.bf16 %v73, %v72
  %v111 = vpack.c.bf16 %v75, %v74
  %v112 = vpack.c.bf16 %v77, %v76
  %v113 = vpack.c.bf16 %v79, %v78
  %v114 = vpack.c.bf16 %v81, %v80
  %v115 = vpack.c.bf16 %v83, %v82
  %v116 = vld [vmem:[%s2] sm:$0xff]
  %v117 = vld [vmem:[%s2 + $0x8] sm:$0xff]
  %119 = vset.pattern.permute.xlu0 0
  %120 = vperm.xlu0 %119, %v116
  %v121 = vpop.permute.xlu0 %120
  %124 = vset.pattern.permute.xlu0 0
  %125 = vperm.xlu0 %124, %v117
  %v126 = vpop.permute.xlu0 %125
  %v130 = vunpack.c.l.b16 %v18
  %v131 = vunpack.c.l.b16 %v19
  %v132 = vpack.c.b16 %v131, %v130
  %vm133 = vcmask 130048
  %v135 = vsel %vm133, %v132, 0
  %v138 = vsel %vm133, %v84, 0
  %v141 = vsel %vm133, %v85, 0
  %v144 = vsel %vm133, %v86, 0
  %v147 = vsel %vm133, %v87, 0
  %v150 = vsel %vm133, %v88, 0
  %v153 = vsel %vm133, %v89, 0
  %v156 = vsel %vm133, %v90, 0
  %v159 = vsel %vm133, %v91, 0
  %v162 = vsel %vm133, %v92, 0
  %v165 = vsel %vm133, %v93, 0
  %v168 = vsel %vm133, %v94, 0
  %v171 = vsel %vm133, %v95, 0
  %v174 = vsel %vm133, %v96, 0
  %v177 = vsel %vm133, %v97, 0
  %v180 = vsel %vm133, %v98, 0
  %v183 = vsel %vm133, %v99, 0
  %v186 = vsel %vm133, %v100, 0
  %v189 = vsel %vm133, %v101, 0
  %v192 = vsel %vm133, %v102, 0
  %v195 = vsel %vm133, %v103, 0
  %v198 = vsel %vm133, %v104, 0
  %v201 = vsel %vm133, %v105, 0
  %v204 = vsel %vm133, %v106, 0
  %v207 = vsel %vm133, %v107, 0
  %v210 = vsel %vm133, %v108, 0
  %v213 = vsel %vm133, %v109, 0
  %v216 = vsel %vm133, %v110, 0
  %v219 = vsel %vm133, %v111, 0
  %v222 = vsel %vm133, %v112, 0
  %v225 = vsel %vm133, %v113, 0
  %v228 = vsel %vm133, %v114, 0
  %v231 = vsel %vm133, %v115, 0
  %233 = vmatpush.bf16.xpose.msra.mxu0 %v159
  %234 = vmatpush.bf16.xpose.msra.mxu0 %v156
  %235 = vmatpush.bf16.xpose.msra.mxu0 %v153
  %236 = vmatpush.bf16.xpose.msra.mxu0 %v150
  %237 = vmatpush.bf16.xpose.msra.mxu0 %v147
  %238 = vmatpush.bf16.xpose.msra.mxu0 %v144
  %239 = vmatpush.bf16.xpose.msra.mxu0 %v141
  %240 = vmatpush.bf16.xpose.msra.mxu0 %v138
  %241 = vmatmul.bf16.gmra.mxu0 %v135
  %v242 = vpop.f32.mrf.mxu0
  %v243 = vadd.f32 %v121, %v242
  %v244 = vpop.f32.mrf.mxu0
  %v245 = vadd.f32 %v126, %v244
  %246 = vdwg.mxu0
  %247 = vmatpush.bf16.xpose.msra.mxu0 %v183
  %248 = vmatpush.bf16.xpose.msra.mxu0 %v180
  %249 = vmatpush.bf16.xpose.msra.mxu0 %v177
  %250 = vmatpush.bf16.xpose.msra.mxu0 %v174
  %251 = vmatpush.bf16.xpose.msra.mxu0 %v171
  %252 = vmatpush.bf16.xpose.msra.mxu0 %v168
  %253 = vmatpush.bf16.xpose.msra.mxu0 %v165
  %254 = vmatpush.bf16.xpose.msra.mxu0 %v162
  %255 = vmatmul.bf16.gmra.mxu0 %v135
  %v256 = vpop.f32.mrf.mxu0
  %v257 = vadd.f32 %v121, %v256
  %v258 = vpop.f32.mrf.mxu0
  %v259 = vadd.f32 %v126, %v258
  %260 = vdwg.mxu0
  %261 = vmatpush.bf16.xpose.msra.mxu0 %v207
  %262 = vmatpush.bf16.xpose.msra.mxu0 %v204
  %263 = vmatpush.bf16.xpose.msra.mxu0 %v201
  %264 = vmatpush.bf16.xpose.msra.mxu0 %v198
  %265 = vmatpush.bf16.xpose.msra.mxu0 %v195
  %266 = vmatpush.bf16.xpose.msra.mxu0 %v192
  %267 = vmatpush.bf16.xpose.msra.mxu0 %v189
  %268 = vmatpush.bf16.xpose.msra.mxu0 %v186
  %269 = vmatmul.bf16.gmra.mxu0 %v135
  %v270 = vpop.f32.mrf.mxu0
  %v271 = vadd.f32 %v121, %v270
  %v272 = vpop.f32.mrf.mxu0
  %v273 = vadd.f32 %v126, %v272
  %274 = vdwg.mxu0
  %275 = vmatpush.bf16.xpose.msra.mxu0 %v231
  %276 = vmatpush.bf16.xpose.msra.mxu0 %v228
  %277 = vmatpush.bf16.xpose.msra.mxu0 %v225
  %278 = vmatpush.bf16.xpose.msra.mxu0 %v222
  %279 = vmatpush.bf16.xpose.msra.mxu0 %v219
  %280 = vmatpush.bf16.xpose.msra.mxu0 %v216
  %281 = vmatpush.bf16.xpose.msra.mxu0 %v213
  %282 = vmatpush.bf16.xpose.msra.mxu0 %v210
  %283 = vmatmul.bf16.gmra.mxu0 %v135
  %v284 = vpop.f32.mrf.mxu0
  %v285 = vadd.f32 %v121, %v284
  %v286 = vpop.f32.mrf.mxu0
  %v287 = vadd.f32 %v126, %v286
  %288 = vdwg.mxu0
  %v289 = vmax.f32 %v243, 0.0
  %v290 = vmax.f32 %v257, 0.0
  %v291 = vmax.f32 %v271, 0.0
  %v292 = vmax.f32 %v285, 0.0
  %v293 = vmax.f32 %v245, 0.0
  %v294 = vmax.f32 %v259, 0.0
  %v295 = vmax.f32 %v273, 0.0
  %v296 = vmax.f32 %v287, 0.0
  %s297 = scalar_lea.vmem %s1, 8
  %v298 = vld [vmem:[%s297] sm:$0xf]
  %v299 = vld [vmem:[%s297 + $0x4] sm:$0xf]
  %v300 = vpack.c.bf16 %v293, %v289
  %v301 = vpack.c.bf16 %v294, %v290
  %v302 = vpack.c.bf16 %v295, %v291
  %v303 = vpack.c.bf16 %v296, %v292
  %s304 = scalar_lea.vmem %s2, 16
  %v305 = vld [vmem:[%s304] sm:$0xff]
  %v306 = vld [vmem:[%s304 + $0x8] sm:$0xff]
  %308 = vset.pattern.permute.xlu0 0
  %309 = vperm.xlu0 %308, %v305
  %v310 = vpop.permute.xlu0 %309
  %313 = vset.pattern.permute.xlu0 0
  %314 = vperm.xlu0 %313, %v306
  %v315 = vpop.permute.xlu0 %314
  %v319 = vunpack.c.l.b16 %v298
  %v320 = vunpack.c.l.b16 %v299
  %v321 = vpack.c.b16 %v320, %v319
  %v323 = vsel %vm133, %v321, 0
  %325 = vmatpush.bf16.msra.mxu0 0
  %326 = vmatpush.bf16.msra.mxu0 0
  %327 = vmatpush.bf16.msra.mxu0 0
  %328 = vmatpush.bf16.msra.mxu0 0
  %329 = vmatpush.bf16.msra.mxu0 0
  %330 = vmatpush.bf16.msra.mxu0 0
  %331 = vmatpush.bf16.msra.mxu0 0
  %332 = vmatpush.bf16.msra.mxu0 %v300
  %333 = vmatmul.bf16.gmra.mxu0 %v323
  %v334 = vpop.f32.mrf.mxu0
  %v335 = vadd.f32 %v310, %v334
  %v336 = vpop.f32.mrf.mxu0
  %v337 = vadd.f32 %v315, %v336
  %338 = vdwg.mxu0
  %339 = vmatpush.bf16.msra.mxu0 0
  %340 = vmatpush.bf16.msra.mxu0 0
  %341 = vmatpush.bf16.msra.mxu0 0
  %342 = vmatpush.bf16.msra.mxu0 0
  %343 = vmatpush.bf16.msra.mxu0 0
  %344 = vmatpush.bf16.msra.mxu0 0
  %345 = vmatpush.bf16.msra.mxu0 0
  %346 = vmatpush.bf16.msra.mxu0 %v301
  %347 = vmatmul.bf16.gmra.mxu0 %v323
  %v348 = vpop.f32.mrf.mxu0
  %v349 = vadd.f32 %v310, %v348
  %v350 = vpop.f32.mrf.mxu0
  %v351 = vadd.f32 %v315, %v350
  %352 = vdwg.mxu0
  %353 = vmatpush.bf16.msra.mxu0 0
  %354 = vmatpush.bf16.msra.mxu0 0
  %355 = vmatpush.bf16.msra.mxu0 0
  %356 = vmatpush.bf16.msra.mxu0 0
  %357 = vmatpush.bf16.msra.mxu0 0
  %358 = vmatpush.bf16.msra.mxu0 0
  %359 = vmatpush.bf16.msra.mxu0 0
  %360 = vmatpush.bf16.msra.mxu0 %v302
  %361 = vmatmul.bf16.gmra.mxu0 %v323
  %v362 = vpop.f32.mrf.mxu0
  %v363 = vadd.f32 %v310, %v362
  %v364 = vpop.f32.mrf.mxu0
  %v365 = vadd.f32 %v315, %v364
  %366 = vdwg.mxu0
  %367 = vmatpush.bf16.msra.mxu0 0
  %368 = vmatpush.bf16.msra.mxu0 0
  %369 = vmatpush.bf16.msra.mxu0 0
  %370 = vmatpush.bf16.msra.mxu0 0
  %371 = vmatpush.bf16.msra.mxu0 0
  %372 = vmatpush.bf16.msra.mxu0 0
  %373 = vmatpush.bf16.msra.mxu0 0
  %374 = vmatpush.bf16.msra.mxu0 %v303
  %375 = vmatmul.bf16.gmra.mxu0 %v323
  %v376 = vpop.f32.mrf.mxu0
  %v377 = vadd.f32 %v310, %v376
  %v378 = vpop.f32.mrf.mxu0
  %v379 = vadd.f32 %v315, %v378
  %380 = vdwg.mxu0
  %v381 = vmax.f32 %v335, 0.0
  %v382 = vmax.f32 %v349, 0.0
  %v383 = vmax.f32 %v363, 0.0
  %v384 = vmax.f32 %v377, 0.0
  %v385 = vmax.f32 %v337, 0.0
  %v386 = vmax.f32 %v351, 0.0
  %v387 = vmax.f32 %v365, 0.0
  %v388 = vmax.f32 %v379, 0.0
  %s389 = scalar_lea.vmem %s1, 16
  %v390 = vld [vmem:[%s389] sm:$0xf]
  %v391 = vld [vmem:[%s389 + $0x4] sm:$0xf]
  %v392 = vpack.c.bf16 %v385, %v381
  %v393 = vpack.c.bf16 %v386, %v382
  %v394 = vpack.c.bf16 %v387, %v383
  %v395 = vpack.c.bf16 %v388, %v384
  %s396 = scalar_lea.vmem %s2, 32
  %v397 = vld [vmem:[%s396] sm:$0xff]
  %v398 = vld [vmem:[%s396 + $0x8] sm:$0xff]
  %400 = vset.pattern.permute.xlu0 0
  %401 = vperm.xlu0 %400, %v397
  %v402 = vpop.permute.xlu0 %401
  %405 = vset.pattern.permute.xlu0 0
  %406 = vperm.xlu0 %405, %v398
  %v407 = vpop.permute.xlu0 %406
  %v411 = vunpack.c.l.b16 %v390
  %v412 = vunpack.c.l.b16 %v391
  %v413 = vpack.c.b16 %v412, %v411
  %v415 = vsel %vm133, %v413, 0
  %417 = vmatpush.bf16.msra.mxu0 0
  %418 = vmatpush.bf16.msra.mxu0 0
  %419 = vmatpush.bf16.msra.mxu0 0
  %420 = vmatpush.bf16.msra.mxu0 0
  %421 = vmatpush.bf16.msra.mxu0 0
  %422 = vmatpush.bf16.msra.mxu0 0
  %423 = vmatpush.bf16.msra.mxu0 0
  %424 = vmatpush.bf16.msra.mxu0 %v392
  %425 = vmatmul.bf16.gmra.mxu0 %v415
  %v426 = vpop.f32.mrf.mxu0
  %v427 = vadd.f32 %v402, %v426
  %v428 = vpop.f32.mrf.mxu0
  %v429 = vadd.f32 %v407, %v428
  %430 = vdwg.mxu0
  %431 = vmatpush.bf16.msra.mxu0 0
  %432 = vmatpush.bf16.msra.mxu0 0
  %433 = vmatpush.bf16.msra.mxu0 0
  %434 = vmatpush.bf16.msra.mxu0 0
  %435 = vmatpush.bf16.msra.mxu0 0
  %436 = vmatpush.bf16.msra.mxu0 0
  %437 = vmatpush.bf16.msra.mxu0 0
  %438 = vmatpush.bf16.msra.mxu0 %v393
  %439 = vmatmul.bf16.gmra.mxu0 %v415
  %v440 = vpop.f32.mrf.mxu0
  %v441 = vadd.f32 %v402, %v440
  %v442 = vpop.f32.mrf.mxu0
  %v443 = vadd.f32 %v407, %v442
  %444 = vdwg.mxu0
  %445 = vmatpush.bf16.msra.mxu0 0
  %446 = vmatpush.bf16.msra.mxu0 0
  %447 = vmatpush.bf16.msra.mxu0 0
  %448 = vmatpush.bf16.msra.mxu0 0
  %449 = vmatpush.bf16.msra.mxu0 0
  %450 = vmatpush.bf16.msra.mxu0 0
  %451 = vmatpush.bf16.msra.mxu0 0
  %452 = vmatpush.bf16.msra.mxu0 %v394
  %453 = vmatmul.bf16.gmra.mxu0 %v415
  %v454 = vpop.f32.mrf.mxu0
  %v455 = vadd.f32 %v402, %v454
  %v456 = vpop.f32.mrf.mxu0
  %v457 = vadd.f32 %v407, %v456
  %458 = vdwg.mxu0
  %459 = vmatpush.bf16.msra.mxu0 0
  %460 = vmatpush.bf16.msra.mxu0 0
  %461 = vmatpush.bf16.msra.mxu0 0
  %462 = vmatpush.bf16.msra.mxu0 0
  %463 = vmatpush.bf16.msra.mxu0 0
  %464 = vmatpush.bf16.msra.mxu0 0
  %465 = vmatpush.bf16.msra.mxu0 0
  %466 = vmatpush.bf16.msra.mxu0 %v395
  %467 = vmatmul.bf16.gmra.mxu0 %v415
  %v468 = vpop.f32.mrf.mxu0
  %v469 = vadd.f32 %v402, %v468
  %v470 = vpop.f32.mrf.mxu0
  %v471 = vadd.f32 %v407, %v470
  %472 = vdwg.mxu0
  %v473 = vmax.f32 %v427, 0.0
  %v474 = vmax.f32 %v441, 0.0
  %v475 = vmax.f32 %v455, 0.0
  %v476 = vmax.f32 %v469, 0.0
  %v477 = vmax.f32 %v429, 0.0
  %v478 = vmax.f32 %v443, 0.0
  %v479 = vmax.f32 %v457, 0.0
  %v480 = vmax.f32 %v471, 0.0
  %s481 = scalar_lea.vmem %s1, 24
  %v482 = vld [vmem:[%s481] sm:$0xf]
  %v483 = vld [vmem:[%s481 + $0x4] sm:$0xf]
  %v484 = vpack.c.bf16 %v477, %v473
  %v485 = vpack.c.bf16 %v478, %v474
  %v486 = vpack.c.bf16 %v479, %v475
  %v487 = vpack.c.bf16 %v480, %v476
  %s488 = scalar_lea.vmem %s2, 48
  %v489 = vld [vmem:[%s488] sm:$0xff]
  %v490 = vld [vmem:[%s488 + $0x8] sm:$0xff]
  %492 = vset.pattern.permute.xlu0 0
  %493 = vperm.xlu0 %492, %v489
  %v494 = vpop.permute.xlu0 %493
  %497 = vset.pattern.permute.xlu0 0
  %498 = vperm.xlu0 %497, %v490
  %v499 = vpop.permute.xlu0 %498
  %v503 = vunpack.c.l.b16 %v482
  %v504 = vunpack.c.l.b16 %v483
  %v505 = vpack.c.b16 %v504, %v503
  %v507 = vsel %vm133, %v505, 0
  %509 = vmatpush.bf16.msra.mxu0 0
  %510 = vmatpush.bf16.msra.mxu0 0
  %511 = vmatpush.bf16.msra.mxu0 0
  %512 = vmatpush.bf16.msra.mxu0 0
  %513 = vmatpush.bf16.msra.mxu0 0
  %514 = vmatpush.bf16.msra.mxu0 0
  %515 = vmatpush.bf16.msra.mxu0 0
  %516 = vmatpush.bf16.msra.mxu0 %v484
  %517 = vmatmul.bf16.gmra.mxu0 %v507
  %v518 = vpop.f32.mrf.mxu0
  %v519 = vadd.f32 %v494, %v518
  %v520 = vpop.f32.mrf.mxu0
  %v521 = vadd.f32 %v499, %v520
  %522 = vdwg.mxu0
  %523 = vmatpush.bf16.msra.mxu0 0
  %524 = vmatpush.bf16.msra.mxu0 0
  %525 = vmatpush.bf16.msra.mxu0 0
  %526 = vmatpush.bf16.msra.mxu0 0
  %527 = vmatpush.bf16.msra.mxu0 0
  %528 = vmatpush.bf16.msra.mxu0 0
  %529 = vmatpush.bf16.msra.mxu0 0
  %530 = vmatpush.bf16.msra.mxu0 %v485
  %531 = vmatmul.bf16.gmra.mxu0 %v507
  %v532 = vpop.f32.mrf.mxu0
  %v533 = vadd.f32 %v494, %v532
  %v534 = vpop.f32.mrf.mxu0
  %v535 = vadd.f32 %v499, %v534
  %536 = vdwg.mxu0
  %537 = vmatpush.bf16.msra.mxu0 0
  %538 = vmatpush.bf16.msra.mxu0 0
  %539 = vmatpush.bf16.msra.mxu0 0
  %540 = vmatpush.bf16.msra.mxu0 0
  %541 = vmatpush.bf16.msra.mxu0 0
  %542 = vmatpush.bf16.msra.mxu0 0
  %543 = vmatpush.bf16.msra.mxu0 0
  %544 = vmatpush.bf16.msra.mxu0 %v486
  %545 = vmatmul.bf16.gmra.mxu0 %v507
  %v546 = vpop.f32.mrf.mxu0
  %v547 = vadd.f32 %v494, %v546
  %v548 = vpop.f32.mrf.mxu0
  %v549 = vadd.f32 %v499, %v548
  %550 = vdwg.mxu0
  %551 = vmatpush.bf16.msra.mxu0 0
  %552 = vmatpush.bf16.msra.mxu0 0
  %553 = vmatpush.bf16.msra.mxu0 0
  %554 = vmatpush.bf16.msra.mxu0 0
  %555 = vmatpush.bf16.msra.mxu0 0
  %556 = vmatpush.bf16.msra.mxu0 0
  %557 = vmatpush.bf16.msra.mxu0 0
  %558 = vmatpush.bf16.msra.mxu0 %v487
  %559 = vmatmul.bf16.gmra.mxu0 %v507
  %v560 = vpop.f32.mrf.mxu0
  %v561 = vadd.f32 %v494, %v560
  %v562 = vpop.f32.mrf.mxu0
  %v563 = vadd.f32 %v499, %v562
  %564 = vdwg.mxu0
  %v565 = vmax.f32 %v519, 0.0
  %v566 = vmax.f32 %v533, 0.0
  %v567 = vmax.f32 %v547, 0.0
  %v568 = vmax.f32 %v561, 0.0
  %v569 = vmax.f32 %v521, 0.0
  %v570 = vmax.f32 %v535, 0.0
  %v571 = vmax.f32 %v549, 0.0
  %v572 = vmax.f32 %v563, 0.0
  %s573 = scalar_lea.vmem %s1, 32
  %v574 = vld [vmem:[%s573] sm:$0xf]
  %v575 = vld [vmem:[%s573 + $0x4] sm:$0xf]
  %v576 = vpack.c.bf16 %v569, %v565
  %v577 = vpack.c.bf16 %v570, %v566
  %v578 = vpack.c.bf16 %v571, %v567
  %v579 = vpack.c.bf16 %v572, %v568
  %s580 = scalar_lea.vmem %s2, 64
  %v581 = vld [vmem:[%s580] sm:$0xff]
  %v582 = vld [vmem:[%s580 + $0x8] sm:$0xff]
  %584 = vset.pattern.permute.xlu0 0
  %585 = vperm.xlu0 %584, %v581
  %v586 = vpop.permute.xlu0 %585
  %589 = vset.pattern.permute.xlu0 0
  %590 = vperm.xlu0 %589, %v582
  %v591 = vpop.permute.xlu0 %590
  %v595 = vunpack.c.l.b16 %v574
  %v596 = vunpack.c.l.b16 %v575
  %v597 = vpack.c.b16 %v596, %v595
  %v599 = vsel %vm133, %v597, 0
  %601 = vmatpush.bf16.msra.mxu0 0
  %602 = vmatpush.bf16.msra.mxu0 0
  %603 = vmatpush.bf16.msra.mxu0 0
  %604 = vmatpush.bf16.msra.mxu0 0
  %605 = vmatpush.bf16.msra.mxu0 0
  %606 = vmatpush.bf16.msra.mxu0 0
  %607 = vmatpush.bf16.msra.mxu0 0
  %608 = vmatpush.bf16.msra.mxu0 %v576
  %609 = vmatmul.bf16.gmra.mxu0 %v599
  %v610 = vpop.f32.mrf.mxu0
  %v611 = vadd.f32 %v586, %v610
  %v612 = vpop.f32.mrf.mxu0
  %v613 = vadd.f32 %v591, %v612
  %614 = vdwg.mxu0
  %615 = vmatpush.bf16.msra.mxu0 0
  %616 = vmatpush.bf16.msra.mxu0 0
  %617 = vmatpush.bf16.msra.mxu0 0
  %618 = vmatpush.bf16.msra.mxu0 0
  %619 = vmatpush.bf16.msra.mxu0 0
  %620 = vmatpush.bf16.msra.mxu0 0
  %621 = vmatpush.bf16.msra.mxu0 0
  %622 = vmatpush.bf16.msra.mxu0 %v577
  %623 = vmatmul.bf16.gmra.mxu0 %v599
  %v624 = vpop.f32.mrf.mxu0
  %v625 = vadd.f32 %v586, %v624
  %v626 = vpop.f32.mrf.mxu0
  %v627 = vadd.f32 %v591, %v626
  %628 = vdwg.mxu0
  %629 = vmatpush.bf16.msra.mxu0 0
  %630 = vmatpush.bf16.msra.mxu0 0
  %631 = vmatpush.bf16.msra.mxu0 0
  %632 = vmatpush.bf16.msra.mxu0 0
  %633 = vmatpush.bf16.msra.mxu0 0
  %634 = vmatpush.bf16.msra.mxu0 0
  %635 = vmatpush.bf16.msra.mxu0 0
  %636 = vmatpush.bf16.msra.mxu0 %v578
  %637 = vmatmul.bf16.gmra.mxu0 %v599
  %v638 = vpop.f32.mrf.mxu0
  %v639 = vadd.f32 %v586, %v638
  %v640 = vpop.f32.mrf.mxu0
  %v641 = vadd.f32 %v591, %v640
  %642 = vdwg.mxu0
  %643 = vmatpush.bf16.msra.mxu0 0
  %644 = vmatpush.bf16.msra.mxu0 0
  %645 = vmatpush.bf16.msra.mxu0 0
  %646 = vmatpush.bf16.msra.mxu0 0
  %647 = vmatpush.bf16.msra.mxu0 0
  %648 = vmatpush.bf16.msra.mxu0 0
  %649 = vmatpush.bf16.msra.mxu0 0
  %650 = vmatpush.bf16.msra.mxu0 %v579
  %651 = vmatmul.bf16.gmra.mxu0 %v599
  %v652 = vpop.f32.mrf.mxu0
  %v653 = vadd.f32 %v586, %v652
  %v654 = vpop.f32.mrf.mxu0
  %v655 = vadd.f32 %v591, %v654
  %656 = vdwg.mxu0
  %v657 = vmax.f32 %v611, 0.0
  %v658 = vmax.f32 %v625, 0.0
  %v659 = vmax.f32 %v639, 0.0
  %v660 = vmax.f32 %v653, 0.0
  %v661 = vmax.f32 %v613, 0.0
  %v662 = vmax.f32 %v627, 0.0
  %v663 = vmax.f32 %v641, 0.0
  %v664 = vmax.f32 %v655, 0.0
  %s665 = scalar_lea.vmem %s1, 40
  %v666 = vld [vmem:[%s665] sm:$0xf]
  %v667 = vld [vmem:[%s665 + $0x4] sm:$0xf]
  %v668 = vpack.c.bf16 %v661, %v657
  %v669 = vpack.c.bf16 %v662, %v658
  %v670 = vpack.c.bf16 %v663, %v659
  %v671 = vpack.c.bf16 %v664, %v660
  %s672 = scalar_lea.vmem %s2, 80
  %v673 = vld [vmem:[%s672] sm:$0xff]
  %v674 = vld [vmem:[%s672 + $0x8] sm:$0xff]
  %676 = vset.pattern.permute.xlu0 0
  %677 = vperm.xlu0 %676, %v673
  %v678 = vpop.permute.xlu0 %677
  %681 = vset.pattern.permute.xlu0 0
  %682 = vperm.xlu0 %681, %v674
  %v683 = vpop.permute.xlu0 %682
  %v687 = vunpack.c.l.b16 %v666
  %v688 = vunpack.c.l.b16 %v667
  %v689 = vpack.c.b16 %v688, %v687
  %v691 = vsel %vm133, %v689, 0
  %693 = vmatpush.bf16.msra.mxu0 0
  %694 = vmatpush.bf16.msra.mxu0 0
  %695 = vmatpush.bf16.msra.mxu0 0
  %696 = vmatpush.bf16.msra.mxu0 0
  %697 = vmatpush.bf16.msra.mxu0 0
  %698 = vmatpush.bf16.msra.mxu0 0
  %699 = vmatpush.bf16.msra.mxu0 0
  %700 = vmatpush.bf16.msra.mxu0 %v668
  %701 = vmatmul.bf16.gmra.mxu0 %v691
  %v702 = vpop.f32.mrf.mxu0
  %v703 = vadd.f32 %v678, %v702
  %v704 = vpop.f32.mrf.mxu0
  %v705 = vadd.f32 %v683, %v704
  %706 = vdwg.mxu0
  %707 = vmatpush.bf16.msra.mxu0 0
  %708 = vmatpush.bf16.msra.mxu0 0
  %709 = vmatpush.bf16.msra.mxu0 0
  %710 = vmatpush.bf16.msra.mxu0 0
  %711 = vmatpush.bf16.msra.mxu0 0
  %712 = vmatpush.bf16.msra.mxu0 0
  %713 = vmatpush.bf16.msra.mxu0 0
  %714 = vmatpush.bf16.msra.mxu0 %v669
  %715 = vmatmul.bf16.gmra.mxu0 %v691
  %v716 = vpop.f32.mrf.mxu0
  %v717 = vadd.f32 %v678, %v716
  %v718 = vpop.f32.mrf.mxu0
  %v719 = vadd.f32 %v683, %v718
  %720 = vdwg.mxu0
  %721 = vmatpush.bf16.msra.mxu0 0
  %722 = vmatpush.bf16.msra.mxu0 0
  %723 = vmatpush.bf16.msra.mxu0 0
  %724 = vmatpush.bf16.msra.mxu0 0
  %725 = vmatpush.bf16.msra.mxu0 0
  %726 = vmatpush.bf16.msra.mxu0 0
  %727 = vmatpush.bf16.msra.mxu0 0
  %728 = vmatpush.bf16.msra.mxu0 %v670
  %729 = vmatmul.bf16.gmra.mxu0 %v691
  %v730 = vpop.f32.mrf.mxu0
  %v731 = vadd.f32 %v678, %v730
  %v732 = vpop.f32.mrf.mxu0
  %v733 = vadd.f32 %v683, %v732
  %734 = vdwg.mxu0
  %735 = vmatpush.bf16.msra.mxu0 0
  %736 = vmatpush.bf16.msra.mxu0 0
  %737 = vmatpush.bf16.msra.mxu0 0
  %738 = vmatpush.bf16.msra.mxu0 0
  %739 = vmatpush.bf16.msra.mxu0 0
  %740 = vmatpush.bf16.msra.mxu0 0
  %741 = vmatpush.bf16.msra.mxu0 0
  %742 = vmatpush.bf16.msra.mxu0 %v671
  %743 = vmatmul.bf16.gmra.mxu0 %v691
  %v744 = vpop.f32.mrf.mxu0
  %v745 = vadd.f32 %v678, %v744
  %v746 = vpop.f32.mrf.mxu0
  %v747 = vadd.f32 %v683, %v746
  %748 = vdwg.mxu0
  %v749 = vmax.f32 %v703, 0.0
  %v750 = vmax.f32 %v717, 0.0
  %v751 = vmax.f32 %v731, 0.0
  %v752 = vmax.f32 %v745, 0.0
  %v753 = vmax.f32 %v705, 0.0
  %v754 = vmax.f32 %v719, 0.0
  %v755 = vmax.f32 %v733, 0.0
  %v756 = vmax.f32 %v747, 0.0
  %s757 = scalar_lea.vmem %s1, 48
  %v758 = vld [vmem:[%s757] sm:$0xf]
  %v759 = vld [vmem:[%s757 + $0x4] sm:$0xf]
  %v760 = vpack.c.bf16 %v753, %v749
  %v761 = vpack.c.bf16 %v754, %v750
  %v762 = vpack.c.bf16 %v755, %v751
  %v763 = vpack.c.bf16 %v756, %v752
  %s764 = scalar_lea.vmem %s2, 96
  %v765 = vld [vmem:[%s764] sm:$0xff]
  %v766 = vld [vmem:[%s764 + $0x8] sm:$0xff]
  %768 = vset.pattern.permute.xlu0 0
  %769 = vperm.xlu0 %768, %v765
  %v770 = vpop.permute.xlu0 %769
  %773 = vset.pattern.permute.xlu0 0
  %774 = vperm.xlu0 %773, %v766
  %v775 = vpop.permute.xlu0 %774
  %v779 = vunpack.c.l.b16 %v758
  %v780 = vunpack.c.l.b16 %v759
  %v781 = vpack.c.b16 %v780, %v779
  %v783 = vsel %vm133, %v781, 0
  %785 = vmatpush.bf16.msra.mxu0 0
  %786 = vmatpush.bf16.msra.mxu0 0
  %787 = vmatpush.bf16.msra.mxu0 0
  %788 = vmatpush.bf16.msra.mxu0 0
  %789 = vmatpush.bf16.msra.mxu0 0
  %790 = vmatpush.bf16.msra.mxu0 0
  %791 = vmatpush.bf16.msra.mxu0 0
  %792 = vmatpush.bf16.msra.mxu0 %v760
  %793 = vmatmul.bf16.gmra.mxu0 %v783
  %v794 = vpop.f32.mrf.mxu0
  %v795 = vadd.f32 %v770, %v794
  %v796 = vpop.f32.mrf.mxu0
  %v797 = vadd.f32 %v775, %v796
  %798 = vdwg.mxu0
  %799 = vmatpush.bf16.msra.mxu0 0
  %800 = vmatpush.bf16.msra.mxu0 0
  %801 = vmatpush.bf16.msra.mxu0 0
  %802 = vmatpush.bf16.msra.mxu0 0
  %803 = vmatpush.bf16.msra.mxu0 0
  %804 = vmatpush.bf16.msra.mxu0 0
  %805 = vmatpush.bf16.msra.mxu0 0
  %806 = vmatpush.bf16.msra.mxu0 %v761
  %807 = vmatmul.bf16.gmra.mxu0 %v783
  %v808 = vpop.f32.mrf.mxu0
  %v809 = vadd.f32 %v770, %v808
  %v810 = vpop.f32.mrf.mxu0
  %v811 = vadd.f32 %v775, %v810
  %812 = vdwg.mxu0
  %813 = vmatpush.bf16.msra.mxu0 0
  %814 = vmatpush.bf16.msra.mxu0 0
  %815 = vmatpush.bf16.msra.mxu0 0
  %816 = vmatpush.bf16.msra.mxu0 0
  %817 = vmatpush.bf16.msra.mxu0 0
  %818 = vmatpush.bf16.msra.mxu0 0
  %819 = vmatpush.bf16.msra.mxu0 0
  %820 = vmatpush.bf16.msra.mxu0 %v762
  %821 = vmatmul.bf16.gmra.mxu0 %v783
  %v822 = vpop.f32.mrf.mxu0
  %v823 = vadd.f32 %v770, %v822
  %v824 = vpop.f32.mrf.mxu0
  %v825 = vadd.f32 %v775, %v824
  %826 = vdwg.mxu0
  %827 = vmatpush.bf16.msra.mxu0 0
  %828 = vmatpush.bf16.msra.mxu0 0
  %829 = vmatpush.bf16.msra.mxu0 0
  %830 = vmatpush.bf16.msra.mxu0 0
  %831 = vmatpush.bf16.msra.mxu0 0
  %832 = vmatpush.bf16.msra.mxu0 0
  %833 = vmatpush.bf16.msra.mxu0 0
  %834 = vmatpush.bf16.msra.mxu0 %v763
  %835 = vmatmul.bf16.gmra.mxu0 %v783
  %v836 = vpop.f32.mrf.mxu0
  %v837 = vadd.f32 %v770, %v836
  %v838 = vpop.f32.mrf.mxu0
  %v839 = vadd.f32 %v775, %v838
  %840 = vdwg.mxu0
  %v841 = vmax.f32 %v795, 0.0
  %v842 = vmax.f32 %v809, 0.0
  %v843 = vmax.f32 %v823, 0.0
  %v844 = vmax.f32 %v837, 0.0
  %v845 = vmax.f32 %v797, 0.0
  %v846 = vmax.f32 %v811, 0.0
  %v847 = vmax.f32 %v825, 0.0
  %v848 = vmax.f32 %v839, 0.0
  %s849 = scalar_lea.vmem %s1, 56
  %v850 = vld [vmem:[%s849] sm:$0xf]
  %v851 = vld [vmem:[%s849 + $0x4] sm:$0xf]
  %v852 = vpack.c.bf16 %v845, %v841
  %v853 = vpack.c.bf16 %v846, %v842
  %v854 = vpack.c.bf16 %v847, %v843
  %v855 = vpack.c.bf16 %v848, %v844
  %s856 = scalar_lea.vmem %s2, 112
  %v857 = vld [vmem:[%s856] sm:$0xff]
  %v858 = vld [vmem:[%s856 + $0x8] sm:$0xff]
  %860 = vset.pattern.permute.xlu0 0
  %861 = vperm.xlu0 %860, %v857
  %v862 = vpop.permute.xlu0 %861
  %865 = vset.pattern.permute.xlu0 0
  %866 = vperm.xlu0 %865, %v858
  %v867 = vpop.permute.xlu0 %866
  %v871 = vunpack.c.l.b16 %v850
  %v872 = vunpack.c.l.b16 %v851
  %v873 = vpack.c.b16 %v872, %v871
  %v875 = vsel %vm133, %v873, 0
  %877 = vmatpush.bf16.msra.mxu0 0
  %878 = vmatpush.bf16.msra.mxu0 0
  %879 = vmatpush.bf16.msra.mxu0 0
  %880 = vmatpush.bf16.msra.mxu0 0
  %881 = vmatpush.bf16.msra.mxu0 0
  %882 = vmatpush.bf16.msra.mxu0 0
  %883 = vmatpush.bf16.msra.mxu0 0
  %884 = vmatpush.bf16.msra.mxu0 %v852
  %885 = vmatmul.bf16.gmra.mxu0 %v875
  %v886 = vpop.f32.mrf.mxu0
  %v887 = vadd.f32 %v862, %v886
  %v888 = vpop.f32.mrf.mxu0
  %v889 = vadd.f32 %v867, %v888
  %890 = vdwg.mxu0
  %891 = vmatpush.bf16.msra.mxu0 0
  %892 = vmatpush.bf16.msra.mxu0 0
  %893 = vmatpush.bf16.msra.mxu0 0
  %894 = vmatpush.bf16.msra.mxu0 0
  %895 = vmatpush.bf16.msra.mxu0 0
  %896 = vmatpush.bf16.msra.mxu0 0
  %897 = vmatpush.bf16.msra.mxu0 0
  %898 = vmatpush.bf16.msra.mxu0 %v853
  %899 = vmatmul.bf16.gmra.mxu0 %v875
  %v900 = vpop.f32.mrf.mxu0
  %v901 = vadd.f32 %v862, %v900
  %v902 = vpop.f32.mrf.mxu0
  %v903 = vadd.f32 %v867, %v902
  %904 = vdwg.mxu0
  %905 = vmatpush.bf16.msra.mxu0 0
  %906 = vmatpush.bf16.msra.mxu0 0
  %907 = vmatpush.bf16.msra.mxu0 0
  %908 = vmatpush.bf16.msra.mxu0 0
  %909 = vmatpush.bf16.msra.mxu0 0
  %910 = vmatpush.bf16.msra.mxu0 0
  %911 = vmatpush.bf16.msra.mxu0 0
  %912 = vmatpush.bf16.msra.mxu0 %v854
  %913 = vmatmul.bf16.gmra.mxu0 %v875
  %v914 = vpop.f32.mrf.mxu0
  %v915 = vadd.f32 %v862, %v914
  %v916 = vpop.f32.mrf.mxu0
  %v917 = vadd.f32 %v867, %v916
  %918 = vdwg.mxu0
  %919 = vmatpush.bf16.msra.mxu0 0
  %920 = vmatpush.bf16.msra.mxu0 0
  %921 = vmatpush.bf16.msra.mxu0 0
  %922 = vmatpush.bf16.msra.mxu0 0
  %923 = vmatpush.bf16.msra.mxu0 0
  %924 = vmatpush.bf16.msra.mxu0 0
  %925 = vmatpush.bf16.msra.mxu0 0
  %926 = vmatpush.bf16.msra.mxu0 %v855
  %927 = vmatmul.bf16.gmra.mxu0 %v875
  %v928 = vpop.f32.mrf.mxu0
  %v929 = vadd.f32 %v862, %v928
  %v930 = vpop.f32.mrf.mxu0
  %v931 = vadd.f32 %v867, %v930
  %932 = vdwg.mxu0
  %v933 = vmax.f32 %v887, 0.0
  %v934 = vmax.f32 %v901, 0.0
  %v935 = vmax.f32 %v915, 0.0
  %v936 = vmax.f32 %v929, 0.0
  %v937 = vmax.f32 %v889, 0.0
  %v938 = vmax.f32 %v903, 0.0
  %v939 = vmax.f32 %v917, 0.0
  %v940 = vmax.f32 %v931, 0.0
  %v941 = vpack.c.bf16 %v937, %v933
  %v942 = vpack.c.bf16 %v938, %v934
  %v943 = vpack.c.bf16 %v939, %v935
  %v944 = vpack.c.bf16 %v940, %v936
  %s945 = scalar_lea.vmem %s1, 64
  %v946 = vld [vmem:[%s945] sm:$0xf]
  %v947 = vld [vmem:[%s945 + $0x4] sm:$0xf]
  %v948 = vld [vmem:[%s3] sm:$0x1]
  %v950 = vperm.slane %v948, 0
  %952 = vxpose.binary.xlu0.c.b16.start [1/16] %v942, %v941, 128
  %953 = vxpose.binary.xlu0.c.b16.cont [2/16] 0, 0, 128
  %954 = vxpose.binary.xlu0.c.b16.cont [3/16] 0, 0, 128
  %955 = vxpose.binary.xlu0.c.b16.cont [4/16] 0, 0, 128
  %956 = vxpose.binary.xlu0.c.b16.cont [5/16] 0, 0, 128
  %957 = vxpose.binary.xlu0.c.b16.cont [6/16] 0, 0, 128
  %958 = vxpose.binary.xlu0.c.b16.cont [7/16] 0, 0, 128
  %959 = vxpose.binary.xlu0.c.b16.end [8/16] 0, 0, 128
  %v960 = vpop.trf.xlu0
  %v961 = vpop.trf.xlu0
  %v962 = vpop.trf.xlu0
  %v963 = vpop.trf.xlu0
  %v964 = vpop.trf.xlu0
  %v965 = vpop.trf.xlu0
  %v966 = vpop.trf.xlu0
  %v967 = vpop.trf.xlu0
  %v968 = vpop.trf.xlu0
  %v969 = vpop.trf.xlu0
  %v970 = vpop.trf.xlu0
  %v971 = vpop.trf.xlu0
  %v972 = vpop.trf.xlu0
  %v973 = vpop.trf.xlu0
  %v974 = vpop.trf.xlu0
  %v975 = vpop.trf.xlu0
  %976 = vxpose.binary.xlu0.c.b16.start [1/16] %v944, %v943, 128
  %977 = vxpose.binary.xlu0.c.b16.cont [2/16] 0, 0, 128
  %978 = vxpose.binary.xlu0.c.b16.cont [3/16] 0, 0, 128
  %979 = vxpose.binary.xlu0.c.b16.cont [4/16] 0, 0, 128
  %980 = vxpose.binary.xlu0.c.b16.cont [5/16] 0, 0, 128
  %981 = vxpose.binary.xlu0.c.b16.cont [6/16] 0, 0, 128
  %982 = vxpose.binary.xlu0.c.b16.cont [7/16] 0, 0, 128
  %983 = vxpose.binary.xlu0.c.b16.end [8/16] 0, 0, 128
  %v984 = vpop.trf.xlu0
  %v985 = vpop.trf.xlu0
  %v986 = vpop.trf.xlu0
  %v987 = vpop.trf.xlu0
  %v988 = vpop.trf.xlu0
  %v989 = vpop.trf.xlu0
  %v990 = vpop.trf.xlu0
  %v991 = vpop.trf.xlu0
  %v992 = vpop.trf.xlu0
  %v993 = vpop.trf.xlu0
  %v994 = vpop.trf.xlu0
  %v995 = vpop.trf.xlu0
  %v996 = vpop.trf.xlu0
  %v997 = vpop.trf.xlu0
  %v998 = vpop.trf.xlu0
  %v999 = vpop.trf.xlu0
  %v1002 = vunpack.c.l.b16 %v946
  %v1003 = vunpack.c.l.b16 %v947
  %v1004 = vpack.c.b16 %v1003, %v1002
  %v1007 = vsel %vm133, %v960, 0
  %v1010 = vsel %vm133, %v962, 0
  %v1013 = vsel %vm133, %v964, 0
  %v1016 = vsel %vm133, %v966, 0
  %v1019 = vsel %vm133, %v968, 0
  %v1022 = vsel %vm133, %v970, 0
  %v1025 = vsel %vm133, %v972, 0
  %v1028 = vsel %vm133, %v974, 0
  %v1031 = vsel %vm133, %v961, 0
  %v1034 = vsel %vm133, %v963, 0
  %v1037 = vsel %vm133, %v965, 0
  %v1040 = vsel %vm133, %v967, 0
  %v1043 = vsel %vm133, %v969, 0
  %v1046 = vsel %vm133, %v971, 0
  %v1049 = vsel %vm133, %v973, 0
  %v1052 = vsel %vm133, %v975, 0
  %v1055 = vsel %vm133, %v984, 0
  %v1058 = vsel %vm133, %v986, 0
  %v1061 = vsel %vm133, %v988, 0
  %v1064 = vsel %vm133, %v990, 0
  %v1067 = vsel %vm133, %v992, 0
  %v1070 = vsel %vm133, %v994, 0
  %v1073 = vsel %vm133, %v996, 0
  %v1076 = vsel %vm133, %v998, 0
  %v1079 = vsel %vm133, %v985, 0
  %v1082 = vsel %vm133, %v987, 0
  %v1085 = vsel %vm133, %v989, 0
  %v1088 = vsel %vm133, %v991, 0
  %v1091 = vsel %vm133, %v993, 0
  %v1094 = vsel %vm133, %v995, 0
  %v1097 = vsel %vm133, %v997, 0
  %v1100 = vsel %vm133, %v999, 0
  %1102 = vmatpush.bf16.msra.mxu0 0
  %1103 = vmatpush.bf16.msra.mxu0 0
  %1104 = vmatpush.bf16.msra.mxu0 0
  %1105 = vmatpush.bf16.msra.mxu0 0
  %1106 = vmatpush.bf16.msra.mxu0 0
  %1107 = vmatpush.bf16.msra.mxu0 0
  %1108 = vmatpush.bf16.msra.mxu0 0
  %1109 = vmatpush.bf16.msra.mxu0 %v1004
  %1110 = vmatmul.bf16.gmra.mxu0 %v1007
  %v1111 = vpop.f32.mrf.mxu0
  %v1112 = vadd.f32 %v950, %v1111
  %v1113 = vpop.f32.mrf.mxu0
  %v1114 = vadd.f32 %v950, %v1113
  %1115 = vmatmul.bf16.gmra.mxu0 %v1010
  %v1116 = vpop.f32.mrf.mxu0
  %v1117 = vadd.f32 %v950, %v1116
  %v1118 = vpop.f32.mrf.mxu0
  %v1119 = vadd.f32 %v950, %v1118
  %1120 = vmatmul.bf16.gmra.mxu0 %v1013
  %v1121 = vpop.f32.mrf.mxu0
  %v1122 = vadd.f32 %v950, %v1121
  %v1123 = vpop.f32.mrf.mxu0
  %v1124 = vadd.f32 %v950, %v1123
  %1125 = vmatmul.bf16.gmra.mxu0 %v1016
  %v1126 = vpop.f32.mrf.mxu0
  %v1127 = vadd.f32 %v950, %v1126
  %v1128 = vpop.f32.mrf.mxu0
  %v1129 = vadd.f32 %v950, %v1128
  %1130 = vmatmul.bf16.gmra.mxu0 %v1019
  %v1131 = vpop.f32.mrf.mxu0
  %v1132 = vadd.f32 %v950, %v1131
  %v1133 = vpop.f32.mrf.mxu0
  %v1134 = vadd.f32 %v950, %v1133
  %1135 = vmatmul.bf16.gmra.mxu0 %v1022
  %v1136 = vpop.f32.mrf.mxu0
  %v1137 = vadd.f32 %v950, %v1136
  %v1138 = vpop.f32.mrf.mxu0
  %v1139 = vadd.f32 %v950, %v1138
  %1140 = vmatmul.bf16.gmra.mxu0 %v1025
  %v1141 = vpop.f32.mrf.mxu0
  %v1142 = vadd.f32 %v950, %v1141
  %v1143 = vpop.f32.mrf.mxu0
  %v1144 = vadd.f32 %v950, %v1143
  %1145 = vmatmul.bf16.gmra.mxu0 %v1028
  %v1146 = vpop.f32.mrf.mxu0
  %v1147 = vadd.f32 %v950, %v1146
  %v1148 = vpop.f32.mrf.mxu0
  %v1149 = vadd.f32 %v950, %v1148
  %1150 = vmatmul.bf16.gmra.mxu0 %v1031
  %v1151 = vpop.f32.mrf.mxu0
  %v1152 = vadd.f32 %v950, %v1151
  %v1153 = vpop.f32.mrf.mxu0
  %v1154 = vadd.f32 %v950, %v1153
  %1155 = vmatmul.bf16.gmra.mxu0 %v1034
  %v1156 = vpop.f32.mrf.mxu0
  %v1157 = vadd.f32 %v950, %v1156
  %v1158 = vpop.f32.mrf.mxu0
  %v1159 = vadd.f32 %v950, %v1158
  %1160 = vmatmul.bf16.gmra.mxu0 %v1037
  %v1161 = vpop.f32.mrf.mxu0
  %v1162 = vadd.f32 %v950, %v1161
  %v1163 = vpop.f32.mrf.mxu0
  %v1164 = vadd.f32 %v950, %v1163
  %1165 = vmatmul.bf16.gmra.mxu0 %v1040
  %v1166 = vpop.f32.mrf.mxu0
  %v1167 = vadd.f32 %v950, %v1166
  %v1168 = vpop.f32.mrf.mxu0
  %v1169 = vadd.f32 %v950, %v1168
  %1170 = vmatmul.bf16.gmra.mxu0 %v1043
  %v1171 = vpop.f32.mrf.mxu0
  %v1172 = vadd.f32 %v950, %v1171
  %v1173 = vpop.f32.mrf.mxu0
  %v1174 = vadd.f32 %v950, %v1173
  %1175 = vmatmul.bf16.gmra.mxu0 %v1046
  %v1176 = vpop.f32.mrf.mxu0
  %v1177 = vadd.f32 %v950, %v1176
  %v1178 = vpop.f32.mrf.mxu0
  %v1179 = vadd.f32 %v950, %v1178
  %1180 = vmatmul.bf16.gmra.mxu0 %v1049
  %v1181 = vpop.f32.mrf.mxu0
  %v1182 = vadd.f32 %v950, %v1181
  %v1183 = vpop.f32.mrf.mxu0
  %v1184 = vadd.f32 %v950, %v1183
  %1185 = vmatmul.bf16.gmra.mxu0 %v1052
  %v1186 = vpop.f32.mrf.mxu0
  %v1187 = vadd.f32 %v950, %v1186
  %v1188 = vpop.f32.mrf.mxu0
  %v1189 = vadd.f32 %v950, %v1188
  %1190 = vmatmul.bf16.gmra.mxu0 %v1055
  %v1191 = vpop.f32.mrf.mxu0
  %v1192 = vadd.f32 %v950, %v1191
  %v1193 = vpop.f32.mrf.mxu0
  %v1194 = vadd.f32 %v950, %v1193
  %1195 = vmatmul.bf16.gmra.mxu0 %v1058
  %v1196 = vpop.f32.mrf.mxu0
  %v1197 = vadd.f32 %v950, %v1196
  %v1198 = vpop.f32.mrf.mxu0
  %v1199 = vadd.f32 %v950, %v1198
  %1200 = vmatmul.bf16.gmra.mxu0 %v1061
  %v1201 = vpop.f32.mrf.mxu0
  %v1202 = vadd.f32 %v950, %v1201
  %v1203 = vpop.f32.mrf.mxu0
  %v1204 = vadd.f32 %v950, %v1203
  %1205 = vmatmul.bf16.gmra.mxu0 %v1064
  %v1206 = vpop.f32.mrf.mxu0
  %v1207 = vadd.f32 %v950, %v1206
  %v1208 = vpop.f32.mrf.mxu0
  %v1209 = vadd.f32 %v950, %v1208
  %1210 = vmatmul.bf16.gmra.mxu0 %v1067
  %v1211 = vpop.f32.mrf.mxu0
  %v1212 = vadd.f32 %v950, %v1211
  %v1213 = vpop.f32.mrf.mxu0
  %v1214 = vadd.f32 %v950, %v1213
  %1215 = vmatmul.bf16.gmra.mxu0 %v1070
  %v1216 = vpop.f32.mrf.mxu0
  %v1217 = vadd.f32 %v950, %v1216
  %v1218 = vpop.f32.mrf.mxu0
  %v1219 = vadd.f32 %v950, %v1218
  %1220 = vmatmul.bf16.gmra.mxu0 %v1073
  %v1221 = vpop.f32.mrf.mxu0
  %v1222 = vadd.f32 %v950, %v1221
  %v1223 = vpop.f32.mrf.mxu0
  %v1224 = vadd.f32 %v950, %v1223
  %1225 = vmatmul.bf16.gmra.mxu0 %v1076
  %v1226 = vpop.f32.mrf.mxu0
  %v1227 = vadd.f32 %v950, %v1226
  %v1228 = vpop.f32.mrf.mxu0
  %v1229 = vadd.f32 %v950, %v1228
  %1230 = vmatmul.bf16.gmra.mxu0 %v1079
  %v1231 = vpop.f32.mrf.mxu0
  %v1232 = vadd.f32 %v950, %v1231
  %v1233 = vpop.f32.mrf.mxu0
  %v1234 = vadd.f32 %v950, %v1233
  %1235 = vmatmul.bf16.gmra.mxu0 %v1082
  %v1236 = vpop.f32.mrf.mxu0
  %v1237 = vadd.f32 %v950, %v1236
  %v1238 = vpop.f32.mrf.mxu0
  %v1239 = vadd.f32 %v950, %v1238
  %1240 = vmatmul.bf16.gmra.mxu0 %v1085
  %v1241 = vpop.f32.mrf.mxu0
  %v1242 = vadd.f32 %v950, %v1241
  %v1243 = vpop.f32.mrf.mxu0
  %v1244 = vadd.f32 %v950, %v1243
  %1245 = vmatmul.bf16.gmra.mxu0 %v1088
  %v1246 = vpop.f32.mrf.mxu0
  %v1247 = vadd.f32 %v950, %v1246
  %v1248 = vpop.f32.mrf.mxu0
  %v1249 = vadd.f32 %v950, %v1248
  %1250 = vmatmul.bf16.gmra.mxu0 %v1091
  %v1251 = vpop.f32.mrf.mxu0
  %v1252 = vadd.f32 %v950, %v1251
  %v1253 = vpop.f32.mrf.mxu0
  %v1254 = vadd.f32 %v950, %v1253
  %1255 = vmatmul.bf16.gmra.mxu0 %v1094
  %v1256 = vpop.f32.mrf.mxu0
  %v1257 = vadd.f32 %v950, %v1256
  %v1258 = vpop.f32.mrf.mxu0
  %v1259 = vadd.f32 %v950, %v1258
  %1260 = vmatmul.bf16.gmra.mxu0 %v1097
  %v1261 = vpop.f32.mrf.mxu0
  %v1262 = vadd.f32 %v950, %v1261
  %v1263 = vpop.f32.mrf.mxu0
  %v1264 = vadd.f32 %v950, %v1263
  %1265 = vmatmul.bf16.gmra.mxu0 %v1100
  %v1266 = vpop.f32.mrf.mxu0
  %v1267 = vadd.f32 %v950, %v1266
  %v1268 = vpop.f32.mrf.mxu0
  %v1269 = vadd.f32 %v950, %v1268
  %1270 = vdwg.mxu0
  %1271 = vst.msk [vmem:[%s4] sm:$0xff] %vm133, %v1112
  %1272 = vst.msk [vmem:[%s4 + $0x8] sm:$0xff] %vm133, %v1114
  %1273 = vst.msk [vmem:[%s4 + $0x10] sm:$0xff] %vm133, %v1117
  %1274 = vst.msk [vmem:[%s4 + $0x18] sm:$0xff] %vm133, %v1119
  %1275 = vst.msk [vmem:[%s4 + $0x20] sm:$0xff] %vm133, %v1122
  %1276 = vst.msk [vmem:[%s4 + $0x28] sm:$0xff] %vm133, %v1124
  %1277 = vst.msk [vmem:[%s4 + $0x30] sm:$0xff] %vm133, %v1127
  %1278 = vst.msk [vmem:[%s4 + $0x38] sm:$0xff] %vm133, %v1129
  %1279 = vst.msk [vmem:[%s4 + $0x40] sm:$0xff] %vm133, %v1132
  %1280 = vst.msk [vmem:[%s4 + $0x48] sm:$0xff] %vm133, %v1134
  %1281 = vst.msk [vmem:[%s4 + $0x50] sm:$0xff] %vm133, %v1137
  %1282 = vst.msk [vmem:[%s4 + $0x58] sm:$0xff] %vm133, %v1139
  %1283 = vst.msk [vmem:[%s4 + $0x60] sm:$0xff] %vm133, %v1142
  %1284 = vst.msk [vmem:[%s4 + $0x68] sm:$0xff] %vm133, %v1144
  %1285 = vst.msk [vmem:[%s4 + $0x70] sm:$0xff] %vm133, %v1147
  %1286 = vst.msk [vmem:[%s4 + $0x78] sm:$0xff] %vm133, %v1149
  %1287 = vst.msk [vmem:[%s4 + $0x80] sm:$0xff] %vm133, %v1152
  %1288 = vst.msk [vmem:[%s4 + $0x88] sm:$0xff] %vm133, %v1154
  %1289 = vst.msk [vmem:[%s4 + $0x90] sm:$0xff] %vm133, %v1157
  %1290 = vst.msk [vmem:[%s4 + $0x98] sm:$0xff] %vm133, %v1159
  %1291 = vst.msk [vmem:[%s4 + $0xa0] sm:$0xff] %vm133, %v1162
  %1292 = vst.msk [vmem:[%s4 + $0xa8] sm:$0xff] %vm133, %v1164
  %1293 = vst.msk [vmem:[%s4 + $0xb0] sm:$0xff] %vm133, %v1167
  %1294 = vst.msk [vmem:[%s4 + $0xb8] sm:$0xff] %vm133, %v1169
  %1295 = vst.msk [vmem:[%s4 + $0xc0] sm:$0xff] %vm133, %v1172
  %1296 = vst.msk [vmem:[%s4 + $0xc8] sm:$0xff] %vm133, %v1174
  %1297 = vst.msk [vmem:[%s4 + $0xd0] sm:$0xff] %vm133, %v1177
  %1298 = vst.msk [vmem:[%s4 + $0xd8] sm:$0xff] %vm133, %v1179
  %1299 = vst.msk [vmem:[%s4 + $0xe0] sm:$0xff] %vm133, %v1182
  %1300 = vst.msk [vmem:[%s4 + $0xe8] sm:$0xff] %vm133, %v1184
  %1301 = vst.msk [vmem:[%s4 + $0xf0] sm:$0xff] %vm133, %v1187
  %1302 = vst.msk [vmem:[%s4 + $0xf8] sm:$0xff] %vm133, %v1189
  %1303 = vst.msk [vmem:[%s4 + $0x100] sm:$0xff] %vm133, %v1192
  %1304 = vst.msk [vmem:[%s4 + $0x108] sm:$0xff] %vm133, %v1194
  %1305 = vst.msk [vmem:[%s4 + $0x110] sm:$0xff] %vm133, %v1197
  %1306 = vst.msk [vmem:[%s4 + $0x118] sm:$0xff] %vm133, %v1199
  %1307 = vst.msk [vmem:[%s4 + $0x120] sm:$0xff] %vm133, %v1202
  %1308 = vst.msk [vmem:[%s4 + $0x128] sm:$0xff] %vm133, %v1204
  %1309 = vst.msk [vmem:[%s4 + $0x130] sm:$0xff] %vm133, %v1207
  %1310 = vst.msk [vmem:[%s4 + $0x138] sm:$0xff] %vm133, %v1209
  %1311 = vst.msk [vmem:[%s4 + $0x140] sm:$0xff] %vm133, %v1212
  %1312 = vst.msk [vmem:[%s4 + $0x148] sm:$0xff] %vm133, %v1214
  %1313 = vst.msk [vmem:[%s4 + $0x150] sm:$0xff] %vm133, %v1217
  %1314 = vst.msk [vmem:[%s4 + $0x158] sm:$0xff] %vm133, %v1219
  %1315 = vst.msk [vmem:[%s4 + $0x160] sm:$0xff] %vm133, %v1222
  %1316 = vst.msk [vmem:[%s4 + $0x168] sm:$0xff] %vm133, %v1224
  %1317 = vst.msk [vmem:[%s4 + $0x170] sm:$0xff] %vm133, %v1227
  %1318 = vst.msk [vmem:[%s4 + $0x178] sm:$0xff] %vm133, %v1229
  %1319 = vst.msk [vmem:[%s4 + $0x180] sm:$0xff] %vm133, %v1232
  %1320 = vst.msk [vmem:[%s4 + $0x188] sm:$0xff] %vm133, %v1234
  %1321 = vst.msk [vmem:[%s4 + $0x190] sm:$0xff] %vm133, %v1237
  %1322 = vst.msk [vmem:[%s4 + $0x198] sm:$0xff] %vm133, %v1239
  %1323 = vst.msk [vmem:[%s4 + $0x1a0] sm:$0xff] %vm133, %v1242
  %1324 = vst.msk [vmem:[%s4 + $0x1a8] sm:$0xff] %vm133, %v1244
  %1325 = vst.msk [vmem:[%s4 + $0x1b0] sm:$0xff] %vm133, %v1247
  %1326 = vst.msk [vmem:[%s4 + $0x1b8] sm:$0xff] %vm133, %v1249
  %1327 = vst.msk [vmem:[%s4 + $0x1c0] sm:$0xff] %vm133, %v1252
  %1328 = vst.msk [vmem:[%s4 + $0x1c8] sm:$0xff] %vm133, %v1254
  %1329 = vst.msk [vmem:[%s4 + $0x1d0] sm:$0xff] %vm133, %v1257
  %1330 = vst.msk [vmem:[%s4 + $0x1d8] sm:$0xff] %vm133, %v1259
  %1331 = vst.msk [vmem:[%s4 + $0x1e0] sm:$0xff] %vm133, %v1262
  %1332 = vst.msk [vmem:[%s4 + $0x1e8] sm:$0xff] %vm133, %v1264
  %1333 = vst.msk [vmem:[%s4 + $0x1f0] sm:$0xff] %vm133, %v1267
  %1334 = vst.msk [vmem:[%s4 + $0x1f8] sm:$0xff] %vm133, %v1269
  // Predicated region
  $region18: #{tpu_custom_call.1} parent=0 // pred_check
    _
  $region19: #{tpu_custom_call.1} parent=0 // pred_check_branch
    %1336 = sbr.rel (0) target = $region21
  $region20: #{tpu_custom_call.1} parent=0 // pred_region
    _
  $region21: #{tpu_custom_call.1} parent=0 // pred_fallthru
    _
  // Predicated region
  $region22: #{tpu_custom_call.1} parent=0 // pred_check
    _
  $region23: #{tpu_custom_call.1} parent=0 // pred_check_branch
    %1338 = sbr.rel (0) target = $region25
  $region24: #{tpu_custom_call.1} parent=0 // pred_region
    _
  $region25: #{tpu_custom_call.1} parent=0 // pred_fallthru
    _

</llo_original>
